<compile_context>
chip_gen: v6e
topology: v6e:2x2x1
jax: 0.10.0
libtpu: 0.0.40
codegen_flags: <defaults>
</compile_context>

<pallas_src>
import functools

import numpy as np
import jax
import jax.numpy as jnp
from jax.experimental import pallas as pl
from jax.experimental.pallas import tpu as pltpu


def _bilinear_matrix(in_size: int, scale: int) -> np.ndarray:
    """Interpolation matrix for nn.Upsample(scale_factor=scale, mode='bilinear',
    align_corners=False) along one axis; shape (in_size*scale, in_size).

    Matches PyTorch: src = (i + 0.5)/scale - 0.5, clamped to >= 0; x0 = floor(src),
    x1 = min(x0 + 1, in-1), lambda = src - x0."""
    out_size = in_size * scale
    i = np.arange(out_size)
    src = (i + 0.5) / scale - 0.5
    src = np.maximum(src, 0.0)
    i0 = np.minimum(np.floor(src).astype(np.int64), in_size - 1)
    i1 = np.minimum(i0 + 1, in_size - 1)
    lam = (src - i0).astype(np.float32)
    A = np.zeros((out_size, in_size), dtype=np.float32)
    A[i, i0] += (1.0 - lam)
    A[i, i1] += lam
    return A


@functools.lru_cache(maxsize=None)
def _row_interp(h: int, scale: int) -> np.ndarray:
    """Per-image row-interpolation matrix, shape (OH, H)."""
    return _bilinear_matrix(h, scale)


@functools.lru_cache(maxsize=None)
def _col_interp_expanded(w: int, c: int, scale: int) -> np.ndarray:
    """Channel-expanded transposed column-interpolation matrix, shape (W*C, OW).
    Row (w*C + c) equals Aw^T[w, :]; conv-weight-independent (true constant)."""
    awt = np.ascontiguousarray(_bilinear_matrix(w, scale).T)     # (W, OW)
    return np.repeat(awt, c, axis=0)                             # (W*C, OW)


def _hw_info():
    """(tensorcores_per_chip, vmem_capacity_bytes) with conservative fallbacks."""
    cores, vmem = 1, 64 * 1024 * 1024
    try:
        info = pltpu.get_tpu_info()
        vmem = int(getattr(info, "vmem_capacity_bytes", vmem) or vmem)
        for attr in ("num_cores", "num_tensorcores", "cores_per_chip", "core_count"):
            v = getattr(info, attr, None)
            if v:
                cores = min(2, int(v))
                break
    except Exception:
        pass
    try:
        kind = jax.devices()[0].device_kind.lower()
        if any(t in kind for t in ("v7", "v4", "v5p")):
            cores = max(cores, 2)
    except Exception:
        pass
    return max(1, cores), max(int(vmem), 16 * 1024 * 1024)


def _seg_head_kernel(bias_ref, x_ref, w_ref, awe_ref, ah_ref, o_ref, tmp_ref,
                     *, bps, h, oh):
    # bias_ref: (1,)            SMEM (scalar-prefetched conv bias)
    # x_ref:    (bps*H, W*C)    lane-dense channels-last activations for bps images
    # w_ref:    (1, W*C)        conv weight tiled per width position
    # awe_ref:  (W*C, OW) bf16  channel-expanded width interpolation (constant)
    # ah_ref:   (OH, H)   f32   per-image row interpolation (constant)
    # o_ref:    (bps*OH, OW)
    # tmp_ref:  (bps*H, OW) f32 scratch
    xw = x_ref[...] * w_ref[...]                       # fold 1x1 conv: one VPU multiply
    awe = awe_ref[...].astype(jnp.float32)             # bf16 -> f32 (exact: entries k/16)
    # MXU matmul 1: width interpolation + channel reduction in one shot.
    tmp_ref[...] = jnp.dot(xw, awe, preferred_element_type=jnp.float32)
    ah = ah_ref[...]
    bias = bias_ref[0]
    # MXU matmul 2: per-image row interpolation (no O(B^2) block-diagonal matrix).
    for i in range(bps):                               # static unroll; bps is TC/VMEM-capped
        rows = tmp_ref[i * h:(i + 1) * h, :]           # aligned static slice (view)
        o_ref[i * oh:(i + 1) * oh, :] = (
            jnp.dot(ah, rows, preferred_element_type=jnp.float32) + bias
        ).astype(o_ref.dtype)


@functools.partial(jax.jit, static_argnames=("scale",))
def segmentation_head(x_nchw, conv_w, conv_b, *, scale: int = 8):
    """x_nchw: (B, C, H, W); conv_w: (1, C, 1, 1); conv_b: (1,).
    Returns (B, 1, H*scale, W*scale), matching the PyTorch module."""
    B, C, H, W = x_nchw.shape
    OH, OW = H * scale, W * scale
    WC = W * C
    assert conv_w.shape == (1, C, 1, 1), "SegmentationHead has a single output class"
    # TODO(synk): extend to num_classes > 1 (the reference module is fixed at 1).

    num_cores, vmem_cap = _hw_info()

    # Images per grid step: one large step per TensorCore, capped by a VMEM budget
    # (budget keeps headroom for double-buffered x/out blocks and internal scratch).
    per_image = (H * WC + OH * OW + H * OW) * 4
    budget = max(vmem_cap // 4, 8 * 1024 * 1024)
    cap = max(1, min(16, budget // max(per_image, 1)))
    if num_cores > 1 and B > 1:
        bps = min(pl.cdiv(B, num_cores), cap)
    else:
        bps = min(B, cap)
    bps = max(1, bps)
    steps = pl.cdiv(B, bps)
    Bp = steps * bps                                   # padded batch (never drop images)

    # Lane-dense activation slab (B*H, W*C): channels-last so the 1x1 conv is a
    # per-column scale.  allow_input_fusion lets XLA fold this relayout into the
    # pallas_call input instead of a separate HBM round trip.
    x2d = jnp.transpose(x_nchw, (0, 2, 3, 1)).reshape(B * H, WC).astype(jnp.float32)
    if Bp != B:
        x2d = jnp.pad(x2d, ((0, (Bp - B) * H), (0, 0)))

    # Constant, conv-independent interpolation matrices (built once per shape, cached).
    awe = jnp.asarray(_col_interp_expanded(W, C, scale), dtype=jnp.bfloat16)   # (W*C, OW)
    ah = jnp.asarray(_row_interp(H, scale), dtype=jnp.float32)                 # (OH, H)

    # Tiny per-call tensors derived from the conv parameters.
    w_tiled = jnp.tile(conv_w.reshape(C).astype(jnp.float32), W).reshape(1, WC)
    bias = conv_b.reshape(1).astype(jnp.float32)

    # VMEM limit sized from the actual blocks (with margin), capped near capacity.
    block_bytes = (bps * H * WC * 4 + 8 * WC * 4 + WC * OW * 2
                   + OH * max(H, 8) * 4 + bps * OH * OW * 4 + bps * H * OW * 4)
    vmem_limit = int(min(max(vmem_cap - (8 << 20), 32 << 20),
                         max(32 << 20, 3 * block_bytes)))

    flops = 2 * Bp * H * WC * OW + 2 * Bp * OH * H * OW + Bp * H * WC
    bytes_accessed = (Bp * H * WC * 4 + WC * OW * 2 + OH * H * 4 + WC * 4 + 4
                      + Bp * OH * OW * 4)

    kernel = functools.partial(_seg_head_kernel, bps=bps, h=H, oh=OH)

    out2d = pl.pallas_call(
        kernel,
        out_shape=jax.ShapeDtypeStruct((Bp * OH, OW), jnp.float32),
        grid_spec=pltpu.PrefetchScalarGridSpec(
            num_scalar_prefetch=1,                     # conv bias -> SMEM
            grid=(steps,),
            in_specs=[
                pl.BlockSpec((bps * H, WC), lambda i, b: (i, 0)),
                pl.BlockSpec((1, WC), lambda i, b: (0, 0)),
                pl.BlockSpec((WC, OW), lambda i, b: (0, 0)),
                pl.BlockSpec((OH, H), lambda i, b: (0, 0)),
            ],
            out_specs=pl.BlockSpec((bps * OH, OW), lambda i, b: (i, 0)),
            scratch_shapes=[pltpu.VMEM((bps * H, OW), jnp.float32)],
        ),
        compiler_params=pltpu.CompilerParams(
            dimension_semantics=("parallel",),
            # operands: (bias, x2d, w_tiled, awe, ah) -- only the activation slab's
            # producer (the NCHW->NHWC relayout) is allowed to fuse into the kernel.
            allow_input_fusion=[False, True, False, False, False],
            vmem_limit_bytes=vmem_limit,
        ),
        cost_estimate=pl.CostEstimate(
            flops=flops, transcendentals=0, bytes_accessed=bytes_accessed),
    )(bias, x2d, w_tiled, awe, ah)

    out2d = out2d[:B * OH]                             # drop batch padding, if any
    return out2d.reshape(B, OH, OW)[:, None, :, :]


def _reference(x_nchw, conv_w, conv_b, scale: int = 8):
    """Unfused pure-JAX reference: 1x1 conv then separable bilinear upsample.
    (Uses the same align_corners=False construction as PyTorch's Upsample; an
    independent torch parity check is out of scope for this self-contained test.)"""
    B, C, H, W = x_nchw.shape
    ah = jnp.asarray(_bilinear_matrix(H, scale))       # (OH, H)
    aw = jnp.asarray(_bilinear_matrix(W, scale))       # (OW, W)
    y = jnp.einsum("bchw,c->bhw", x_nchw.astype(jnp.float32),
                   conv_w.reshape(C).astype(jnp.float32)) + conv_b.reshape(())
    out = jnp.einsum("oh,bhw,pw->bop", ah, y, aw)
    return out[:, None, :, :]


if __name__ == "__main__":
    # Small shapes consistent with the module: batch=2, hidden_size=32, spatial=16.
    B, HIDDEN, H, W = 2, 32, 16, 16

    key = jax.random.PRNGKey(0)
    kx, kw, kb = jax.random.split(key, 3)

    x = jax.random.normal(kx, (B, HIDDEN, H, W), dtype=jnp.float32)            # NCHW input
    conv_w = jax.random.normal(kw, (1, HIDDEN, 1, 1), dtype=jnp.float32) * 0.1
    conv_b = jax.random.normal(kb, (1,), dtype=jnp.float32) * 0.1

    out = segmentation_head(x, conv_w, conv_b, scale=8)
    out = jax.block_until_ready(out)

    assert out.shape == (B, 1, H * 8, W * 8), out.shape
    assert out.dtype == jnp.float32

    ref = jax.block_until_ready(_reference(x, conv_w, conv_b, scale=8))
    np.testing.assert_allclose(np.asarray(out), np.asarray(ref), rtol=1e-4, atol=1e-4)

    print("KERNEL_OK")
</pallas_src>

<mosaic_0001>
module attributes {stable_mosaic.version = 11 : i64} {
  func.func @_seg_head_kernel(%arg0: i32, %arg1: memref<1xf32, #tpu.memory_space<smem>>, %arg2: memref<32x512xf32, #tpu.memory_space<vmem>>, %arg3: memref<1x512xf32, #tpu.memory_space<vmem>>, %arg4: memref<512x128xbf16, #tpu.memory_space<vmem>>, %arg5: memref<128x16xf32, #tpu.memory_space<vmem>>, %arg6: memref<256x128xf32, #tpu.memory_space<vmem>>, %arg7: memref<32x128xf32, #tpu.memory_space<vmem>>) attributes {dimension_semantics = [#tpu.dimension_semantics<parallel>], iteration_bounds = array<i64: 1>, scalar_prefetch = 1 : i64, scratch_operands = 1 : i64, tpu.core_type = #tpu.core_type<tc>, window_params = [{transform_indices = @transform_0, window_bounds = array<i64: 32, 512>}, {pipeline_mode = #tpu.pipeline_mode<synchronous>, transform_indices = @transform_1, window_bounds = array<i64: 1, 512>}, {pipeline_mode = #tpu.pipeline_mode<synchronous>, transform_indices = @transform_2, window_bounds = array<i64: 512, 128>}, {pipeline_mode = #tpu.pipeline_mode<synchronous>, transform_indices = @transform_3, window_bounds = array<i64: 128, 16>}, {transform_indices = @transform_4, window_bounds = array<i64: 256, 128>}]} {
    %c0 = arith.constant 0 : index
    %c0_0 = arith.constant 0 : index
    %0 = vector.load %arg2[%c0, %c0_0] : memref<32x512xf32, #tpu.memory_space<vmem>>, vector<32x512xf32>
    %c0_1 = arith.constant 0 : index
    %c0_2 = arith.constant 0 : index
    %1 = vector.load %arg3[%c0_1, %c0_2] : memref<1x512xf32, #tpu.memory_space<vmem>>, vector<1x512xf32>
    %2 = vector.broadcast %1 : vector<1x512xf32> to vector<32x512xf32>
    %3 = arith.mulf %0, %2 : vector<32x512xf32>
    %c0_3 = arith.constant 0 : index
    %c0_4 = arith.constant 0 : index
    %4 = vector.load %arg4[%c0_3, %c0_4] : memref<512x128xbf16, #tpu.memory_space<vmem>>, vector<512x128xbf16>
    %5 = arith.extf %4 : vector<512x128xbf16> to vector<512x128xf32>
    %cst = arith.constant dense<0.000000e+00> : vector<32x128xf32>
    %6 = tpu.matmul %3, %5, %cst {dimension_numbers = #tpu.dot_dimension_numbers<[1], [0], [0], [1], [0, 0, 1, 1], [], []>} : vector<32x512xf32>, vector<512x128xf32>, vector<32x128xf32> -> vector<32x128xf32>
    %c0_5 = arith.constant 0 : index
    %c0_6 = arith.constant 0 : index
    %7 = vector.load %arg7[%c0_5, %c0_6] : memref<32x128xf32, #tpu.memory_space<vmem>>, vector<32x128xf32>
    tpu.vector_store %arg7[%c0_5, %c0_6], %6 {strides = array<i32>} : memref<32x128xf32, #tpu.memory_space<vmem>>, vector<32x128xf32>,
    %c0_7 = arith.constant 0 : index
    %c0_8 = arith.constant 0 : index
    %8 = vector.load %arg5[%c0_7, %c0_8] : memref<128x16xf32, #tpu.memory_space<vmem>>, vector<128x16xf32>
    %c0_9 = arith.constant 0 : index
    %9 = memref.load %arg1[%c0_9] : memref<1xf32, #tpu.memory_space<smem>>
    %c0_10 = arith.constant 0 : index
    %c0_11 = arith.constant 0 : index
    %10 = vector.load %arg7[%c0_10, %c0_11] : memref<32x128xf32, #tpu.memory_space<vmem>>, vector<16x128xf32>
    %cst_12 = arith.constant dense<0.000000e+00> : vector<128x128xf32>
    %11 = tpu.matmul %8, %10, %cst_12 {dimension_numbers = #tpu.dot_dimension_numbers<[1], [0], [0], [1], [0, 0, 1, 1], [], []>} : vector<128x16xf32>, vector<16x128xf32>, vector<128x128xf32> -> vector<128x128xf32>
    %12 = vector.broadcast %9 : f32 to vector<128x128xf32>
    %13 = arith.addf %11, %12 : vector<128x128xf32>
    %c0_13 = arith.constant 0 : index
    %c0_14 = arith.constant 0 : index
    %14 = vector.load %arg6[%c0_13, %c0_14] : memref<256x128xf32, #tpu.memory_space<vmem>>, vector<128x128xf32>
    tpu.vector_store %arg6[%c0_13, %c0_14], %13 {strides = array<i32>} : memref<256x128xf32, #tpu.memory_space<vmem>>, vector<128x128xf32>,
    %c16 = arith.constant 16 : index
    %c0_15 = arith.constant 0 : index
    %15 = vector.load %arg7[%c16, %c0_15] : memref<32x128xf32, #tpu.memory_space<vmem>>, vector<16x128xf32>
    %cst_16 = arith.constant dense<0.000000e+00> : vector<128x128xf32>
    %16 = tpu.matmul %8, %15, %cst_16 {dimension_numbers = #tpu.dot_dimension_numbers<[1], [0], [0], [1], [0, 0, 1, 1], [], []>} : vector<128x16xf32>, vector<16x128xf32>, vector<128x128xf32> -> vector<128x128xf32>
    %17 = vector.broadcast %9 : f32 to vector<128x128xf32>
    %18 = arith.addf %16, %17 : vector<128x128xf32>
    %c128 = arith.constant 128 : index
    %c0_17 = arith.constant 0 : index
    %19 = vector.load %arg6[%c128, %c0_17] : memref<256x128xf32, #tpu.memory_space<vmem>>, vector<128x128xf32>
    tpu.vector_store %arg6[%c128, %c0_17], %18 {strides = array<i32>} : memref<256x128xf32, #tpu.memory_space<vmem>>, vector<128x128xf32>,
    return
  }
  func.func @transform_0(%arg0: i32, %arg1: memref<1xf32, #tpu.memory_space<smem>>) -> (i32, i32) {
    %c0_i32 = arith.constant 0 : i32
    %c0_i32_0 = arith.constant 0 : i32
    return %arg0, %c0_i32 : i32, i32
  }
  func.func @transform_1(%arg0: i32, %arg1: memref<1xf32, #tpu.memory_space<smem>>) -> (i32, i32) {
    %c0_i32 = arith.constant 0 : i32
    %c0_i32_0 = arith.constant 0 : i32
    %c0_i32_1 = arith.constant 0 : i32
    return %c0_i32, %c0_i32_0 : i32, i32
  }
  func.func @transform_2(%arg0: i32, %arg1: memref<1xf32, #tpu.memory_space<smem>>) -> (i32, i32) {
    %c0_i32 = arith.constant 0 : i32
    %c0_i32_0 = arith.constant 0 : i32
    %c0_i32_1 = arith.constant 0 : i32
    return %c0_i32, %c0_i32_0 : i32, i32
  }
  func.func @transform_3(%arg0: i32, %arg1: memref<1xf32, #tpu.memory_space<smem>>) -> (i32, i32) {
    %c0_i32 = arith.constant 0 : i32
    %c0_i32_0 = arith.constant 0 : i32
    %c0_i32_1 = arith.constant 0 : i32
    return %c0_i32, %c0_i32_0 : i32, i32
  }
  func.func @transform_4(%arg0: i32, %arg1: memref<1xf32, #tpu.memory_space<smem>>) -> (i32, i32) {
    %c0_i32 = arith.constant 0 : i32
    %c0_i32_0 = arith.constant 0 : i32
    return %arg0, %c0_i32 : i32, i32
  }
}

</mosaic_0001>

<llo_original>
// kernel: tile.7
$region0: #{tile.7}
  %s0 = inlined_call_operand.vmem [shape: f32[16,32], index: 0, kind: input, shape index: {}]
  %s1 = inlined_call_operand.vmem [shape: f32[1,512], index: 1, kind: output, shape index: {}]
  $region1: #{tile.7} parent=0
    #allocation0 [shape = 'u8[16384]{0}', space=vmem, size = 0x4000, scoped, tag = 'scoped mem for output reshape']
    %v2 = vld [vmem:[%s0] ss:$4 sm:$0xf]
    %vm3 = vcmask 261120
    %4 = vst.msk [vmem:[#allocation0] ss:$8 sm:$0xf] %vm3, %v2
    %s5 = scalar_lea.vmem %s0, 3
    %v6 = vld [vmem:[%s5] ss:$4 sm:$0xf]
    %7 = vrot.lane.b32.xlu0 %v6, 96
    %v8 = vpop.permute.xlu0 %7
    %vm9 = vcmask 1048320
    %10 = vst.msk [vmem:[#allocation0] ss:$8 sm:$0xf] %vm9, %v8
    %s11 = scalar_lea.vmem %s0, 2
    %v12 = vld [vmem:[%s11] ss:$4 sm:$0xf]
    %13 = vrot.lane.b32.xlu0 %v12, 64
    %v14 = vpop.permute.xlu0 %13
    %vm15 = vcmask 785920
    %16 = vst.msk [vmem:[#allocation0] ss:$8 sm:$0xf] %vm15, %v14
    %s17 = scalar_lea.vmem %s0, 1
    %v18 = vld [vmem:[%s17] ss:$4 sm:$0xf]
    %19 = vrot.lane.b32.xlu0 %v18, 32
    %v20 = vpop.permute.xlu0 %19
    %vm21 = vcmask 523520
    %22 = vst.msk [vmem:[#allocation0] ss:$8 sm:$0xf] %vm21, %v20
    %s24 = sshll.u32 1, 1
    %s25 = ssub.s32 %s24, 1
    %v27 = vld [vmem:[#allocation0] sm:%s25]
    %s28 = sshll.u32 1, 1
    %s29 = ssub.s32 %s28, 1
    %30 = vst [vmem:[%s1] sm:%s29] %v27
    %s31 = scalar_lea.vmem [#allocation0], 8
    %v32 = vld [vmem:[%s31] sm:%s25]
    %s33 = sshll.u32 1, 1
    %s34 = ssub.s32 %s33, 1
    %s35 = scalar_lea.vmem %s1, 1
    %36 = vst [vmem:[%s35] sm:%s34] %v32
    %s37 = scalar_lea.vmem [#allocation0], 16
    %v38 = vld [vmem:[%s37] sm:%s25]
    %s39 = sshll.u32 1, 1
    %s40 = ssub.s32 %s39, 1
    %s41 = smul.addr 1, 2
    %s42 = scalar_lea.vmem %s1, %s41
    %43 = vst [vmem:[%s42] sm:%s40] %v38
    %s44 = scalar_lea.vmem [#allocation0], 24
    %v45 = vld [vmem:[%s44] sm:%s25]
    %s46 = sshll.u32 1, 1
    %s47 = ssub.s32 %s46, 1
    %s48 = smul.addr 1, 3
    %s49 = scalar_lea.vmem %s1, %s48
    %50 = vst [vmem:[%s49] sm:%s47] %v45

// kernel: tile.6
$region0: #{tile.6}
  #allocation0 [shape = 's32[1]{0}', space=sflag, size = 0x4, scoped, tag = 'scoped memory for tile.6']
  %s0 = inlined_call_operand.vmem [shape: f32[32], index: 0, kind: input, shape index: {}]
  %s1 = inlined_call_operand.vmem [shape: f32[16,32], index: 1, kind: output, shape index: {}]
  // Predicated region
  $region2: #{tile.6} parent=0 // pred_check
    _
  $region3: #{tile.6} parent=0 // pred_check_branch
    %3 = sbr.rel (0) target = $region5
  $region4: #{tile.6} parent=0 // pred_region
    _
  $region5: #{tile.6} parent=0 // pred_fallthru
    _
  %v4 = vld [vmem:[%s0] ss:$0 sm:$0xff]
  %5 = vst [vmem:[%s1] sm:$0xff] %v4
  %s6 = scalar_lea.vmem %s1, 8
  %7 = vst [vmem:[%s6] sm:$0xff] %v4

// kernel: segmentation_head.1
$region0: #{segmentation_head.1}
  #allocation0 [shape = 'u32[]', space=smem, size = 0x4, offset = 0x4, fixed_abs, tag = 'smem constant byte address 0x4 - core index']
  #allocation1 [shape = 'u32[144,128]{1,0:T(1,128)}', space=vmem, size = 0x12000, scoped, tag = 'internal scratch']
  #allocation2 [shape = 'f32[32,128]{1,0:T(8,128)}', space=vmem, size = 0x4000, scoped, tag = 'scratch operand']
  #allocation3 [shape = 's32[1]{0}', space=sflag, size = 0x4, scoped, tag = 'scoped memory for segmentation_head.1']
  #allocation4 [shape = 'f32[1]{0:T(128)S(6)}', space=smem, size = 0x200, scoped, tag = 'prefetched SMEM operand 0']
  %s0 = inlined_call_operand.<no memory space> [shape: f32[1], index: 0, kind: input, shape index: {}]
  %s1 = inlined_call_operand.vmem [shape: f32[32,512], index: 1, kind: input, shape index: {}]
  %s2 = inlined_call_operand.vmem [shape: f32[1,512], index: 2, kind: input, shape index: {}]
  %s3 = inlined_call_operand.vmem [shape: bf16[512,128], index: 3, kind: input, shape index: {}]
  %s4 = inlined_call_operand.vmem [shape: f32[128,16], index: 4, kind: input, shape index: {}]
  %s5 = inlined_call_operand.hbm [shape: f32[256,128], index: 5, kind: output, shape index: {}]
  %s6 = sld [smem:[#allocation0]]
  $region26: #{segmentation_head.1} parent=0
    _
  %s8 = ssub.s32 1, %s6
  %s9 = scalar_select 0, %s8, %s6
  %10 = sst [smem:[#allocation4]] %s0
  $region1: #{segmentation_head.1} parent=0
    #allocation5 [shape = 'u8[131072]{0}', space=vmem, size = 0x20000, scoped, tag = 'output window, operand 0, single buffered']
    #allocation6 [shape = 's32[1]{0}', space=sflag, size = 0x4, scoped, tag = 'scoped memory for segmentation_head.1']
    %11 = vsyncpa [#allocation6], 0
    // Predicated region
    $region2: #{segmentation_head.1} parent=1 // pred_check
      _
    $region3: #{segmentation_head.1} parent=1 // pred_check_branch
      %13 = sbr.rel (0) target = $region5
    $region4: #{segmentation_head.1} parent=1 // pred_region
      _
    $region5: #{segmentation_head.1} parent=1 // pred_fallthru
      _
    // Predicated region
    $region6: #{segmentation_head.1} parent=1 // pred_check
      _
    $region7: #{segmentation_head.1} parent=1 // pred_check_branch
      %15 = sbr.rel (0) target = $region9
    $region8: #{segmentation_head.1} parent=1 // pred_region
      _
    $region9: #{segmentation_head.1} parent=1 // pred_fallthru
      _
    // Predicated region
    $region10: #{segmentation_head.1} parent=1 // pred_check
      _
    $region11: #{segmentation_head.1} parent=1 // pred_check_branch
      %17 = sbr.rel (0) target = $region13
    $region12: #{segmentation_head.1} parent=1 // pred_region
      _
    $region13: #{segmentation_head.1} parent=1 // pred_fallthru
      _
    // Predicated region
    $region14: #{segmentation_head.1} parent=1 // pred_check
      _
    $region15: #{segmentation_head.1} parent=1 // pred_check_branch
      %19 = sbr.rel (0) target = $region17
    $region16: #{segmentation_head.1} parent=1 // pred_region
      _
    $region17: #{segmentation_head.1} parent=1 // pred_fallthru
      _
    %v20 = vld [vmem:[%s1] sm:$0xff]
    %v21 = vld [vmem:[%s1 + $0x8] sm:$0xff]
    %v22 = vld [vmem:[%s1 + $0x10] sm:$0xff]
    %v23 = vld [vmem:[%s1 + $0x18] sm:$0xff]
    %v24 = vld [vmem:[%s1 + $0x20] sm:$0xff]
    %v25 = vld [vmem:[%s1 + $0x28] sm:$0xff]
    %v26 = vld [vmem:[%s1 + $0x30] sm:$0xff]
    %v27 = vld [vmem:[%s1 + $0x38] sm:$0xff]
    %v28 = vld [vmem:[%s1 + $0x40] sm:$0xff]
    %v29 = vld [vmem:[%s1 + $0x48] sm:$0xff]
    %v30 = vld [vmem:[%s1 + $0x50] sm:$0xff]
    %v31 = vld [vmem:[%s1 + $0x58] sm:$0xff]
    %v32 = vld [vmem:[%s1 + $0x60] sm:$0xff]
    %v33 = vld [vmem:[%s1 + $0x68] sm:$0xff]
    %v34 = vld [vmem:[%s1 + $0x70] sm:$0xff]
    %v35 = vld [vmem:[%s1 + $0x78] sm:$0xff]
    %v36 = vld [vmem:[%s2] sm:$0xf]
    %v38 = vlaneseq
    %v39 = vshrl.u32 %v38, 7
    %v40 = vsub.s32 0, %v39
    %v41 = vrot.slane %v36, %v40
    %v42 = vlaneseq
    %v43 = vshrl.u32 %v42, 7
    %v44 = vsub.s32 1, %v43
    %v45 = vrot.slane %v36, %v44
    %v46 = vlaneseq
    %v47 = vshrl.u32 %v46, 7
    %v48 = vsub.s32 2, %v47
    %v49 = vrot.slane %v36, %v48
    %v50 = vlaneseq
    %v51 = vshrl.u32 %v50, 7
    %v52 = vsub.s32 3, %v51
    %v53 = vrot.slane %v36, %v52
    %v58 = vmul.f32 %v20, %v41
    %v59 = vmul.f32 %v21, %v45
    %v60 = vmul.f32 %v22, %v49
    %v61 = vmul.f32 %v23, %v53
    %v62 = vmul.f32 %v24, %v41
    %v63 = vmul.f32 %v25, %v45
    %v64 = vmul.f32 %v26, %v49
    %v65 = vmul.f32 %v27, %v53
    %v66 = vmul.f32 %v28, %v41
    %v67 = vmul.f32 %v29, %v45
    %v68 = vmul.f32 %v30, %v49
    %v69 = vmul.f32 %v31, %v53
    %v70 = vmul.f32 %v32, %v41
    %v71 = vmul.f32 %v33, %v45
    %v72 = vmul.f32 %v34, %v49
    %v73 = vmul.f32 %v35, %v53
    %v74 = vld [vmem:[%s3] sm:$0xf]
    %v75 = vld [vmem:[%s3 + $0x4] sm:$0xf]
    %v76 = vld [vmem:[%s3 + $0x8] sm:$0xf]
    %v77 = vld [vmem:[%s3 + $0xc] sm:$0xf]
    %v78 = vld [vmem:[%s3 + $0x10] sm:$0xf]
    %v79 = vld [vmem:[%s3 + $0x14] sm:$0xf]
    %v80 = vld [vmem:[%s3 + $0x18] sm:$0xf]
    %v81 = vld [vmem:[%s3 + $0x1c] sm:$0xf]
    %v82 = vld [vmem:[%s3 + $0x20] sm:$0xf]
    %v83 = vld [vmem:[%s3 + $0x24] sm:$0xf]
    %v84 = vld [vmem:[%s3 + $0x28] sm:$0xf]
    %v85 = vld [vmem:[%s3 + $0x2c] sm:$0xf]
    %v86 = vld [vmem:[%s3 + $0x30] sm:$0xf]
    %v87 = vld [vmem:[%s3 + $0x34] sm:$0xf]
    %v88 = vld [vmem:[%s3 + $0x38] sm:$0xf]
    %v89 = vld [vmem:[%s3 + $0x3c] sm:$0xf]
    %v90 = vld [vmem:[%s3 + $0x40] sm:$0xf]
    %v91 = vld [vmem:[%s3 + $0x44] sm:$0xf]
    %v92 = vld [vmem:[%s3 + $0x48] sm:$0xf]
    %v93 = vld [vmem:[%s3 + $0x4c] sm:$0xf]
    %v94 = vld [vmem:[%s3 + $0x50] sm:$0xf]
    %v95 = vld [vmem:[%s3 + $0x54] sm:$0xf]
    %v96 = vld [vmem:[%s3 + $0x58] sm:$0xf]
    %v97 = vld [vmem:[%s3 + $0x5c] sm:$0xf]
    %v98 = vld [vmem:[%s3 + $0x60] sm:$0xf]
    %v99 = vld [vmem:[%s3 + $0x64] sm:$0xf]
    %v100 = vld [vmem:[%s3 + $0x68] sm:$0xf]
    %v101 = vld [vmem:[%s3 + $0x6c] sm:$0xf]
    %v102 = vld [vmem:[%s3 + $0x70] sm:$0xf]
    %v103 = vld [vmem:[%s3 + $0x74] sm:$0xf]
    %v104 = vld [vmem:[%s3 + $0x78] sm:$0xf]
    %v105 = vld [vmem:[%s3 + $0x7c] sm:$0xf]
    %v106 = vld [vmem:[%s3 + $0x80] sm:$0xf]
    %v107 = vld [vmem:[%s3 + $0x84] sm:$0xf]
    %v108 = vld [vmem:[%s3 + $0x88] sm:$0xf]
    %v109 = vld [vmem:[%s3 + $0x8c] sm:$0xf]
    %v110 = vld [vmem:[%s3 + $0x90] sm:$0xf]
    %v111 = vld [vmem:[%s3 + $0x94] sm:$0xf]
    %v112 = vld [vmem:[%s3 + $0x98] sm:$0xf]
    %v113 = vld [vmem:[%s3 + $0x9c] sm:$0xf]
    %v114 = vld [vmem:[%s3 + $0xa0] sm:$0xf]
    %v115 = vld [vmem:[%s3 + $0xa4] sm:$0xf]
    %v116 = vld [vmem:[%s3 + $0xa8] sm:$0xf]
    %v117 = vld [vmem:[%s3 + $0xac] sm:$0xf]
    %v118 = vld [vmem:[%s3 + $0xb0] sm:$0xf]
    %v119 = vld [vmem:[%s3 + $0xb4] sm:$0xf]
    %v120 = vld [vmem:[%s3 + $0xb8] sm:$0xf]
    %v121 = vld [vmem:[%s3 + $0xbc] sm:$0xf]
    %v122 = vld [vmem:[%s3 + $0xc0] sm:$0xf]
    %v123 = vld [vmem:[%s3 + $0xc4] sm:$0xf]
    %v124 = vld [vmem:[%s3 + $0xc8] sm:$0xf]
    %v125 = vld [vmem:[%s3 + $0xcc] sm:$0xf]
    %v126 = vld [vmem:[%s3 + $0xd0] sm:$0xf]
    %v127 = vld [vmem:[%s3 + $0xd4] sm:$0xf]
    %v128 = vld [vmem:[%s3 + $0xd8] sm:$0xf]
    %v129 = vld [vmem:[%s3 + $0xdc] sm:$0xf]
    %v130 = vld [vmem:[%s3 + $0xe0] sm:$0xf]
    %v131 = vld [vmem:[%s3 + $0xe4] sm:$0xf]
    %v132 = vld [vmem:[%s3 + $0xe8] sm:$0xf]
    %v133 = vld [vmem:[%s3 + $0xec] sm:$0xf]
    %v134 = vld [vmem:[%s3 + $0xf0] sm:$0xf]
    %v135 = vld [vmem:[%s3 + $0xf4] sm:$0xf]
    %v136 = vld [vmem:[%s3 + $0xf8] sm:$0xf]
    %v137 = vld [vmem:[%s3 + $0xfc] sm:$0xf]
    %v138 = vunpack.c.l.bf16 %v74
    %v139 = vunpack.c.l.bf16 %v75
    %v140 = vunpack.c.l.bf16 %v76
    %v141 = vunpack.c.l.bf16 %v77
    %v142 = vunpack.c.l.bf16 %v78
    %v143 = vunpack.c.l.bf16 %v79
    %v144 = vunpack.c.l.bf16 %v80
    %v145 = vunpack.c.l.bf16 %v81
    %v146 = vunpack.c.l.bf16 %v82
    %v147 = vunpack.c.l.bf16 %v83
    %v148 = vunpack.c.l.bf16 %v84
    %v149 = vunpack.c.l.bf16 %v85
    %v150 = vunpack.c.l.bf16 %v86
    %v151 = vunpack.c.l.bf16 %v87
    %v152 = vunpack.c.l.bf16 %v88
    %v153 = vunpack.c.l.bf16 %v89
    %v154 = vunpack.c.l.bf16 %v90
    %v155 = vunpack.c.l.bf16 %v91
    %v156 = vunpack.c.l.bf16 %v92
    %v157 = vunpack.c.l.bf16 %v93
    %v158 = vunpack.c.l.bf16 %v94
    %v159 = vunpack.c.l.bf16 %v95
    %v160 = vunpack.c.l.bf16 %v96
    %v161 = vunpack.c.l.bf16 %v97
    %v162 = vunpack.c.l.bf16 %v98
    %v163 = vunpack.c.l.bf16 %v99
    %v164 = vunpack.c.l.bf16 %v100
    %v165 = vunpack.c.l.bf16 %v101
    %v166 = vunpack.c.l.bf16 %v102
    %v167 = vunpack.c.l.bf16 %v103
    %v168 = vunpack.c.l.bf16 %v104
    %v169 = vunpack.c.l.bf16 %v105
    %v170 = vunpack.c.l.bf16 %v106
    %v171 = vunpack.c.l.bf16 %v107
    %v172 = vunpack.c.l.bf16 %v108
    %v173 = vunpack.c.l.bf16 %v109
    %v174 = vunpack.c.l.bf16 %v110
    %v175 = vunpack.c.l.bf16 %v111
    %v176 = vunpack.c.l.bf16 %v112
    %v177 = vunpack.c.l.bf16 %v113
    %v178 = vunpack.c.l.bf16 %v114
    %v179 = vunpack.c.l.bf16 %v115
    %v180 = vunpack.c.l.bf16 %v116
    %v181 = vunpack.c.l.bf16 %v117
    %v182 = vunpack.c.l.bf16 %v118
    %v183 = vunpack.c.l.bf16 %v119
    %v184 = vunpack.c.l.bf16 %v120
    %v185 = vunpack.c.l.bf16 %v121
    %v186 = vunpack.c.l.bf16 %v122
    %v187 = vunpack.c.l.bf16 %v123
    %v188 = vunpack.c.l.bf16 %v124
    %v189 = vunpack.c.l.bf16 %v125
    %v190 = vunpack.c.l.bf16 %v126
    %v191 = vunpack.c.l.bf16 %v127
    %v192 = vunpack.c.l.bf16 %v128
    %v193 = vunpack.c.l.bf16 %v129
    %v194 = vunpack.c.l.bf16 %v130
    %v195 = vunpack.c.l.bf16 %v131
    %v196 = vunpack.c.l.bf16 %v132
    %v197 = vunpack.c.l.bf16 %v133
    %v198 = vunpack.c.l.bf16 %v134
    %v199 = vunpack.c.l.bf16 %v135
    %v200 = vunpack.c.l.bf16 %v136
    %v201 = vunpack.c.l.bf16 %v137
    %202 = vmatprep.subr.mxu0 0.0
    %203 = vmatpush1.msra.mxu0 %v153
    %204 = vmatprep.subr.mxu0 0.0
    %205 = vmatpush1.msra.mxu0 %v152
    %206 = vmatprep.subr.mxu0 0.0
    %207 = vmatpush1.msra.mxu0 %v151
    %208 = vmatprep.subr.mxu0 0.0
    %209 = vmatpush1.msra.mxu0 %v150
    %210 = vmatprep.subr.mxu0 0.0
    %211 = vmatpush1.msra.mxu0 %v149
    %212 = vmatprep.subr.mxu0 0.0
    %213 = vmatpush1.msra.mxu0 %v148
    %214 = vmatprep.subr.mxu0 0.0
    %215 = vmatpush1.msra.mxu0 %v147
    %216 = vmatprep.subr.mxu0 0.0
    %217 = vmatpush1.msra.mxu0 %v146
    %218 = vmatprep.subr.mxu0 0.0
    %219 = vmatpush1.msra.mxu0 %v145
    %220 = vmatprep.subr.mxu0 0.0
    %221 = vmatpush1.msra.mxu0 %v144
    %222 = vmatprep.subr.mxu0 0.0
    %223 = vmatpush1.msra.mxu0 %v143
    %224 = vmatprep.subr.mxu0 0.0
    %225 = vmatpush1.msra.mxu0 %v142
    %226 = vmatprep.subr.mxu0 0.0
    %227 = vmatpush1.msra.mxu0 %v141
    %228 = vmatprep.subr.mxu0 0.0
    %229 = vmatpush1.msra.mxu0 %v140
    %230 = vmatprep.subr.mxu0 0.0
    %231 = vmatpush1.msra.mxu0 %v139
    %232 = vmatprep.subr.mxu0 0.0
    %233 = vmatpush1.msra.mxu0 %v138
    %234 = vmatprep.subr.mxu0 0.0
    %235 = vmatpush2.msra.mxu0 %v169
    %236 = vmatprep.subr.mxu0 0.0
    %237 = vmatpush2.msra.mxu0 %v168
    %238 = vmatprep.subr.mxu0 0.0
    %239 = vmatpush2.msra.mxu0 %v167
    %240 = vmatprep.subr.mxu0 0.0
    %241 = vmatpush2.msra.mxu0 %v166
    %242 = vmatprep.subr.mxu0 0.0
    %243 = vmatpush2.msra.mxu0 %v165
    %244 = vmatprep.subr.mxu0 0.0
    %245 = vmatpush2.msra.mxu0 %v164
    %246 = vmatprep.subr.mxu0 0.0
    %247 = vmatpush2.msra.mxu0 %v163
    %248 = vmatprep.subr.mxu0 0.0
    %249 = vmatpush2.msra.mxu0 %v162
    %250 = vmatprep.subr.mxu0 0.0
    %251 = vmatpush2.msra.mxu0 %v161
    %252 = vmatprep.subr.mxu0 0.0
    %253 = vmatpush2.msra.mxu0 %v160
    %254 = vmatprep.subr.mxu0 0.0
    %255 = vmatpush2.msra.mxu0 %v159
    %256 = vmatprep.subr.mxu0 0.0
    %257 = vmatpush2.msra.mxu0 %v158
    %258 = vmatprep.subr.mxu0 0.0
    %259 = vmatpush2.msra.mxu0 %v157
    %260 = vmatprep.subr.mxu0 0.0
    %261 = vmatpush2.msra.mxu0 %v156
    %262 = vmatprep.subr.mxu0 0.0
    %263 = vmatpush2.msra.mxu0 %v155
    %264 = vmatprep.subr.mxu0 0.0
    %265 = vmatpush2.msra.mxu0 %v154
    %266 = vmatprep.mubr.f32.mxu0 %v59
    %267 = vmatmul.mubr.f32.gmra.mxu0 %v58
    %v268 = vpop.f32.mrf.mxu0
    %v269 = vadd.f32 0.0, %v268
    %v270 = vpop.f32.mrf.mxu0
    %271 = vmatprep.mubr.f32.mxu0 %v63
    %272 = vmatmul.mubr.f32.gmra.mxu0 %v62
    %v273 = vpop.f32.mrf.mxu0
    %v274 = vadd.f32 0.0, %v273
    %v275 = vpop.f32.mrf.mxu0
    %276 = vmatprep.mubr.f32.mxu0 %v67
    %277 = vmatmul.mubr.f32.gmra.mxu0 %v66
    %v278 = vpop.f32.mrf.mxu0
    %v279 = vadd.f32 0.0, %v278
    %v280 = vpop.f32.mrf.mxu0
    %281 = vmatprep.mubr.f32.mxu0 %v71
    %282 = vmatmul.mubr.f32.gmra.mxu0 %v70
    %v283 = vpop.f32.mrf.mxu0
    %v284 = vadd.f32 0.0, %v283
    %v285 = vpop.f32.mrf.mxu0
    %286 = vdwg.mxu0
    %287 = vmatprep.subr.mxu0 0.0
    %288 = vmatpush1.msra.mxu0 %v185
    %289 = vmatprep.subr.mxu0 0.0
    %290 = vmatpush1.msra.mxu0 %v184
    %291 = vmatprep.subr.mxu0 0.0
    %292 = vmatpush1.msra.mxu0 %v183
    %293 = vmatprep.subr.mxu0 0.0
    %294 = vmatpush1.msra.mxu0 %v182
    %295 = vmatprep.subr.mxu0 0.0
    %296 = vmatpush1.msra.mxu0 %v181
    %297 = vmatprep.subr.mxu0 0.0
    %298 = vmatpush1.msra.mxu0 %v180
    %299 = vmatprep.subr.mxu0 0.0
    %300 = vmatpush1.msra.mxu0 %v179
    %301 = vmatprep.subr.mxu0 0.0
    %302 = vmatpush1.msra.mxu0 %v178
    %303 = vmatprep.subr.mxu0 0.0
    %304 = vmatpush1.msra.mxu0 %v177
    %305 = vmatprep.subr.mxu0 0.0
    %306 = vmatpush1.msra.mxu0 %v176
    %307 = vmatprep.subr.mxu0 0.0
    %308 = vmatpush1.msra.mxu0 %v175
    %309 = vmatprep.subr.mxu0 0.0
    %310 = vmatpush1.msra.mxu0 %v174
    %311 = vmatprep.subr.mxu0 0.0
    %312 = vmatpush1.msra.mxu0 %v173
    %313 = vmatprep.subr.mxu0 0.0
    %314 = vmatpush1.msra.mxu0 %v172
    %315 = vmatprep.subr.mxu0 0.0
    %316 = vmatpush1.msra.mxu0 %v171
    %317 = vmatprep.subr.mxu0 0.0
    %318 = vmatpush1.msra.mxu0 %v170
    %319 = vmatprep.subr.mxu0 0.0
    %320 = vmatpush2.msra.mxu0 %v201
    %321 = vmatprep.subr.mxu0 0.0
    %322 = vmatpush2.msra.mxu0 %v200
    %323 = vmatprep.subr.mxu0 0.0
    %324 = vmatpush2.msra.mxu0 %v199
    %325 = vmatprep.subr.mxu0 0.0
    %326 = vmatpush2.msra.mxu0 %v198
    %327 = vmatprep.subr.mxu0 0.0
    %328 = vmatpush2.msra.mxu0 %v197
    %329 = vmatprep.subr.mxu0 0.0
    %330 = vmatpush2.msra.mxu0 %v196
    %331 = vmatprep.subr.mxu0 0.0
    %332 = vmatpush2.msra.mxu0 %v195
    %333 = vmatprep.subr.mxu0 0.0
    %334 = vmatpush2.msra.mxu0 %v194
    %335 = vmatprep.subr.mxu0 0.0
    %336 = vmatpush2.msra.mxu0 %v193
    %337 = vmatprep.subr.mxu0 0.0
    %338 = vmatpush2.msra.mxu0 %v192
    %339 = vmatprep.subr.mxu0 0.0
    %340 = vmatpush2.msra.mxu0 %v191
    %341 = vmatprep.subr.mxu0 0.0
    %342 = vmatpush2.msra.mxu0 %v190
    %343 = vmatprep.subr.mxu0 0.0
    %344 = vmatpush2.msra.mxu0 %v189
    %345 = vmatprep.subr.mxu0 0.0
    %346 = vmatpush2.msra.mxu0 %v188
    %347 = vmatprep.subr.mxu0 0.0
    %348 = vmatpush2.msra.mxu0 %v187
    %349 = vmatprep.subr.mxu0 0.0
    %350 = vmatpush2.msra.mxu0 %v186
    %351 = vmatprep.mubr.f32.mxu0 %v61
    %352 = vmatmul.mubr.f32.gmra.mxu0 %v60
    %v353 = vpop.f32.mrf.mxu0
    %v354 = vadd.f32 %v269, %v353
    %v355 = vpop.f32.mrf.mxu0
    %356 = vmatprep.mubr.f32.mxu0 %v65
    %357 = vmatmul.mubr.f32.gmra.mxu0 %v64
    %v358 = vpop.f32.mrf.mxu0
    %v359 = vadd.f32 %v274, %v358
    %v360 = vpop.f32.mrf.mxu0
    %361 = vmatprep.mubr.f32.mxu0 %v69
    %362 = vmatmul.mubr.f32.gmra.mxu0 %v68
    %v363 = vpop.f32.mrf.mxu0
    %v364 = vadd.f32 %v279, %v363
    %v365 = vpop.f32.mrf.mxu0
    %366 = vmatprep.mubr.f32.mxu0 %v73
    %367 = vmatmul.mubr.f32.gmra.mxu0 %v72
    %v368 = vpop.f32.mrf.mxu0
    %v369 = vadd.f32 %v284, %v368
    %v370 = vpop.f32.mrf.mxu0
    %371 = vdwg.mxu0
    %372 = vst [vmem:[#allocation2] sm:$0xff] %v354
    %373 = vst [vmem:[#allocation2 + $0x8] sm:$0xff] %v359
    %374 = vst [vmem:[#allocation2 + $0x10] sm:$0xff] %v364
    %375 = vst [vmem:[#allocation2 + $0x18] sm:$0xff] %v369
    %v376 = vld [vmem:[%s4] sm:$0xff]
    %v377 = vld [vmem:[%s4 + $0x8] sm:$0xff]
    %v378 = vld [vmem:[%s4 + $0x10] sm:$0xff]
    %v379 = vld [vmem:[%s4 + $0x18] sm:$0xff]
    %v380 = vld [vmem:[%s4 + $0x20] sm:$0xff]
    %v381 = vld [vmem:[%s4 + $0x28] sm:$0xff]
    %v382 = vld [vmem:[%s4 + $0x30] sm:$0xff]
    %v383 = vld [vmem:[%s4 + $0x38] sm:$0xff]
    %v384 = vld [vmem:[%s4 + $0x40] sm:$0xff]
    %v385 = vld [vmem:[%s4 + $0x48] sm:$0xff]
    %v386 = vld [vmem:[%s4 + $0x50] sm:$0xff]
    %v387 = vld [vmem:[%s4 + $0x58] sm:$0xff]
    %v388 = vld [vmem:[%s4 + $0x60] sm:$0xff]
    %v389 = vld [vmem:[%s4 + $0x68] sm:$0xff]
    %v390 = vld [vmem:[%s4 + $0x70] sm:$0xff]
    %v391 = vld [vmem:[%s4 + $0x78] sm:$0xff]
    %s392 = sld [smem:[#allocation4]]
    %v393 = vld [vmem:[#allocation2] sm:$0xff]
    %v394 = vld [vmem:[#allocation2 + $0x8] sm:$0xff]
    %v395 = vstv %s392
    %vm396 = vcmask 130048
    %v398 = vsel %vm396, %v376, 0
    %v401 = vsel %vm396, %v377, 0
    %v404 = vsel %vm396, %v378, 0
    %v407 = vsel %vm396, %v379, 0
    %v410 = vsel %vm396, %v380, 0
    %v413 = vsel %vm396, %v381, 0
    %v416 = vsel %vm396, %v382, 0
    %v419 = vsel %vm396, %v383, 0
    %v422 = vsel %vm396, %v384, 0
    %v425 = vsel %vm396, %v385, 0
    %v428 = vsel %vm396, %v386, 0
    %v431 = vsel %vm396, %v387, 0
    %v434 = vsel %vm396, %v388, 0
    %v437 = vsel %vm396, %v389, 0
    %v440 = vsel %vm396, %v390, 0
    %v443 = vsel %vm396, %v391, 0
    %445 = vmatprep.subr.mxu0 0.0
    %446 = vmatpush1.msra.mxu0 0.0
    %447 = vmatprep.subr.mxu0 0.0
    %448 = vmatpush1.msra.mxu0 0.0
    %449 = vmatprep.subr.mxu0 0.0
    %450 = vmatpush1.msra.mxu0 0.0
    %451 = vmatprep.subr.mxu0 0.0
    %452 = vmatpush1.msra.mxu0 0.0
    %453 = vmatprep.subr.mxu0 0.0
    %454 = vmatpush1.msra.mxu0 0.0
    %455 = vmatprep.subr.mxu0 0.0
    %456 = vmatpush1.msra.mxu0 0.0
    %457 = vmatprep.subr.mxu0 0.0
    %458 = vmatpush1.msra.mxu0 0.0
    %459 = vmatprep.subr.mxu0 0.0
    %460 = vmatpush1.msra.mxu0 0.0
    %461 = vmatprep.subr.mxu0 0.0
    %462 = vmatpush1.msra.mxu0 0.0
    %463 = vmatprep.subr.mxu0 0.0
    %464 = vmatpush1.msra.mxu0 0.0
    %465 = vmatprep.subr.mxu0 0.0
    %466 = vmatpush1.msra.mxu0 0.0
    %467 = vmatprep.subr.mxu0 0.0
    %468 = vmatpush1.msra.mxu0 0.0
    %469 = vmatprep.subr.mxu0 0.0
    %470 = vmatpush1.msra.mxu0 0.0
    %471 = vmatprep.subr.mxu0 0.0
    %472 = vmatpush1.msra.mxu0 0.0
    %473 = vmatprep.subr.mxu0 0.0
    %474 = vmatpush1.msra.mxu0 %v394
    %475 = vmatprep.subr.mxu0 0.0
    %476 = vmatpush1.msra.mxu0 %v393
    %477 = vmatprep.subr.mxu0 0.0
    %478 = vmatpush2.msra.mxu0 0.0
    %479 = vmatprep.subr.mxu0 0.0
    %480 = vmatpush2.msra.mxu0 0.0
    %481 = vmatprep.subr.mxu0 0.0
    %482 = vmatpush2.msra.mxu0 0.0
    %483 = vmatprep.subr.mxu0 0.0
    %484 = vmatpush2.msra.mxu0 0.0
    %485 = vmatprep.subr.mxu0 0.0
    %486 = vmatpush2.msra.mxu0 0.0
    %487 = vmatprep.subr.mxu0 0.0
    %488 = vmatpush2.msra.mxu0 0.0
    %489 = vmatprep.subr.mxu0 0.0
    %490 = vmatpush2.msra.mxu0 0.0
    %491 = vmatprep.subr.mxu0 0.0
    %492 = vmatpush2.msra.mxu0 0.0
    %493 = vmatprep.subr.mxu0 0.0
    %494 = vmatpush2.msra.mxu0 0.0
    %495 = vmatprep.subr.mxu0 0.0
    %496 = vmatpush2.msra.mxu0 0.0
    %497 = vmatprep.subr.mxu0 0.0
    %498 = vmatpush2.msra.mxu0 0.0
    %499 = vmatprep.subr.mxu0 0.0
    %500 = vmatpush2.msra.mxu0 0.0
    %501 = vmatprep.subr.mxu0 0.0
    %502 = vmatpush2.msra.mxu0 0.0
    %503 = vmatprep.subr.mxu0 0.0
    %504 = vmatpush2.msra.mxu0 0.0
    %505 = vmatprep.subr.mxu0 0.0
    %506 = vmatpush2.msra.mxu0 0.0
    %507 = vmatprep.subr.mxu0 0.0
    %508 = vmatpush2.msra.mxu0 0.0
    %509 = vmatprep.mubr.f32.mxu0 0.0
    %510 = vmatmul.mubr.f32.gmra.mxu0 %v398
    %v511 = vpop.f32.mrf.mxu0
    %v512 = vadd.f32 %v395, %v511
    %v513 = vpop.f32.mrf.mxu0
    %514 = vmatprep.mubr.f32.mxu0 0.0
    %515 = vmatmul.mubr.f32.gmra.mxu0 %v401
    %v516 = vpop.f32.mrf.mxu0
    %v517 = vadd.f32 %v395, %v516
    %v518 = vpop.f32.mrf.mxu0
    %519 = vmatprep.mubr.f32.mxu0 0.0
    %520 = vmatmul.mubr.f32.gmra.mxu0 %v404
    %v521 = vpop.f32.mrf.mxu0
    %v522 = vadd.f32 %v395, %v521
    %v523 = vpop.f32.mrf.mxu0
    %524 = vmatprep.mubr.f32.mxu0 0.0
    %525 = vmatmul.mubr.f32.gmra.mxu0 %v407
    %v526 = vpop.f32.mrf.mxu0
    %v527 = vadd.f32 %v395, %v526
    %v528 = vpop.f32.mrf.mxu0
    %529 = vmatprep.mubr.f32.mxu0 0.0
    %530 = vmatmul.mubr.f32.gmra.mxu0 %v410
    %v531 = vpop.f32.mrf.mxu0
    %v532 = vadd.f32 %v395, %v531
    %v533 = vpop.f32.mrf.mxu0
    %534 = vmatprep.mubr.f32.mxu0 0.0
    %535 = vmatmul.mubr.f32.gmra.mxu0 %v413
    %v536 = vpop.f32.mrf.mxu0
    %v537 = vadd.f32 %v395, %v536
    %v538 = vpop.f32.mrf.mxu0
    %539 = vmatprep.mubr.f32.mxu0 0.0
    %540 = vmatmul.mubr.f32.gmra.mxu0 %v416
    %v541 = vpop.f32.mrf.mxu0
    %v542 = vadd.f32 %v395, %v541
    %v543 = vpop.f32.mrf.mxu0
    %544 = vmatprep.mubr.f32.mxu0 0.0
    %545 = vmatmul.mubr.f32.gmra.mxu0 %v419
    %v546 = vpop.f32.mrf.mxu0
    %v547 = vadd.f32 %v395, %v546
    %v548 = vpop.f32.mrf.mxu0
    %549 = vmatprep.mubr.f32.mxu0 0.0
    %550 = vmatmul.mubr.f32.gmra.mxu0 %v422
    %v551 = vpop.f32.mrf.mxu0
    %v552 = vadd.f32 %v395, %v551
    %v553 = vpop.f32.mrf.mxu0
    %554 = vmatprep.mubr.f32.mxu0 0.0
    %555 = vmatmul.mubr.f32.gmra.mxu0 %v425
    %v556 = vpop.f32.mrf.mxu0
    %v557 = vadd.f32 %v395, %v556
    %v558 = vpop.f32.mrf.mxu0
    %559 = vmatprep.mubr.f32.mxu0 0.0
    %560 = vmatmul.mubr.f32.gmra.mxu0 %v428
    %v561 = vpop.f32.mrf.mxu0
    %v562 = vadd.f32 %v395, %v561
    %v563 = vpop.f32.mrf.mxu0
    %564 = vmatprep.mubr.f32.mxu0 0.0
    %565 = vmatmul.mubr.f32.gmra.mxu0 %v431
    %v566 = vpop.f32.mrf.mxu0
    %v567 = vadd.f32 %v395, %v566
    %v568 = vpop.f32.mrf.mxu0
    %569 = vmatprep.mubr.f32.mxu0 0.0
    %570 = vmatmul.mubr.f32.gmra.mxu0 %v434
    %v571 = vpop.f32.mrf.mxu0
    %v572 = vadd.f32 %v395, %v571
    %v573 = vpop.f32.mrf.mxu0
    %574 = vmatprep.mubr.f32.mxu0 0.0
    %575 = vmatmul.mubr.f32.gmra.mxu0 %v437
    %v576 = vpop.f32.mrf.mxu0
    %v577 = vadd.f32 %v395, %v576
    %v578 = vpop.f32.mrf.mxu0
    %579 = vmatprep.mubr.f32.mxu0 0.0
    %580 = vmatmul.mubr.f32.gmra.mxu0 %v440
    %v581 = vpop.f32.mrf.mxu0
    %v582 = vadd.f32 %v395, %v581
    %v583 = vpop.f32.mrf.mxu0
    %584 = vmatprep.mubr.f32.mxu0 0.0
    %585 = vmatmul.mubr.f32.gmra.mxu0 %v443
    %v586 = vpop.f32.mrf.mxu0
    %v587 = vadd.f32 %v395, %v586
    %v588 = vpop.f32.mrf.mxu0
    %589 = vdwg.mxu0
    %590 = vst [vmem:[#allocation5] sm:$0xff] %v512
    %591 = vst [vmem:[#allocation5 + $0x8] sm:$0xff] %v517
    %592 = vst [vmem:[#allocation5 + $0x10] sm:$0xff] %v522
    %593 = vst [vmem:[#allocation5 + $0x18] sm:$0xff] %v527
    %594 = vst [vmem:[#allocation5 + $0x20] sm:$0xff] %v532
    %595 = vst [vmem:[#allocation5 + $0x28] sm:$0xff] %v537
    %596 = vst [vmem:[#allocation5 + $0x30] sm:$0xff] %v542
    %597 = vst [vmem:[#allocation5 + $0x38] sm:$0xff] %v547
    %598 = vst [vmem:[#allocation5 + $0x40] sm:$0xff] %v552
    %599 = vst [vmem:[#allocation5 + $0x48] sm:$0xff] %v557
    %600 = vst [vmem:[#allocation5 + $0x50] sm:$0xff] %v562
    %601 = vst [vmem:[#allocation5 + $0x58] sm:$0xff] %v567
    %602 = vst [vmem:[#allocation5 + $0x60] sm:$0xff] %v572
    %603 = vst [vmem:[#allocation5 + $0x68] sm:$0xff] %v577
    %604 = vst [vmem:[#allocation5 + $0x70] sm:$0xff] %v582
    %605 = vst [vmem:[#allocation5 + $0x78] sm:$0xff] %v587
    %v606 = vld [vmem:[#allocation2 + $0x10] sm:$0xff]
    %v607 = vld [vmem:[#allocation2 + $0x18] sm:$0xff]
    %608 = vmatprep.subr.mxu0 0.0
    %609 = vmatpush1.msra.mxu0 0.0
    %610 = vmatprep.subr.mxu0 0.0
    %611 = vmatpush1.msra.mxu0 0.0
    %612 = vmatprep.subr.mxu0 0.0
    %613 = vmatpush1.msra.mxu0 0.0
    %614 = vmatprep.subr.mxu0 0.0
    %615 = vmatpush1.msra.mxu0 0.0
    %616 = vmatprep.subr.mxu0 0.0
    %617 = vmatpush1.msra.mxu0 0.0
    %618 = vmatprep.subr.mxu0 0.0
    %619 = vmatpush1.msra.mxu0 0.0
    %620 = vmatprep.subr.mxu0 0.0
    %621 = vmatpush1.msra.mxu0 0.0
    %622 = vmatprep.subr.mxu0 0.0
    %623 = vmatpush1.msra.mxu0 0.0
    %624 = vmatprep.subr.mxu0 0.0
    %625 = vmatpush1.msra.mxu0 0.0
    %626 = vmatprep.subr.mxu0 0.0
    %627 = vmatpush1.msra.mxu0 0.0
    %628 = vmatprep.subr.mxu0 0.0
    %629 = vmatpush1.msra.mxu0 0.0
    %630 = vmatprep.subr.mxu0 0.0
    %631 = vmatpush1.msra.mxu0 0.0
    %632 = vmatprep.subr.mxu0 0.0
    %633 = vmatpush1.msra.mxu0 0.0
    %634 = vmatprep.subr.mxu0 0.0
    %635 = vmatpush1.msra.mxu0 0.0
    %636 = vmatprep.subr.mxu0 0.0
    %637 = vmatpush1.msra.mxu0 %v607
    %638 = vmatprep.subr.mxu0 0.0
    %639 = vmatpush1.msra.mxu0 %v606
    %640 = vmatprep.subr.mxu0 0.0
    %641 = vmatpush2.msra.mxu0 0.0
    %642 = vmatprep.subr.mxu0 0.0
    %643 = vmatpush2.msra.mxu0 0.0
    %644 = vmatprep.subr.mxu0 0.0
    %645 = vmatpush2.msra.mxu0 0.0
    %646 = vmatprep.subr.mxu0 0.0
    %647 = vmatpush2.msra.mxu0 0.0
    %648 = vmatprep.subr.mxu0 0.0
    %649 = vmatpush2.msra.mxu0 0.0
    %650 = vmatprep.subr.mxu0 0.0
    %651 = vmatpush2.msra.mxu0 0.0
    %652 = vmatprep.subr.mxu0 0.0
    %653 = vmatpush2.msra.mxu0 0.0
    %654 = vmatprep.subr.mxu0 0.0
    %655 = vmatpush2.msra.mxu0 0.0
    %656 = vmatprep.subr.mxu0 0.0
    %657 = vmatpush2.msra.mxu0 0.0
    %658 = vmatprep.subr.mxu0 0.0
    %659 = vmatpush2.msra.mxu0 0.0
    %660 = vmatprep.subr.mxu0 0.0
    %661 = vmatpush2.msra.mxu0 0.0
    %662 = vmatprep.subr.mxu0 0.0
    %663 = vmatpush2.msra.mxu0 0.0
    %664 = vmatprep.subr.mxu0 0.0
    %665 = vmatpush2.msra.mxu0 0.0
    %666 = vmatprep.subr.mxu0 0.0
    %667 = vmatpush2.msra.mxu0 0.0
    %668 = vmatprep.subr.mxu0 0.0
    %669 = vmatpush2.msra.mxu0 0.0
    %670 = vmatprep.subr.mxu0 0.0
    %671 = vmatpush2.msra.mxu0 0.0
    %672 = vmatprep.mubr.f32.mxu0 0.0
    %673 = vmatmul.mubr.f32.gmra.mxu0 %v398
    %v674 = vpop.f32.mrf.mxu0
    %v675 = vadd.f32 %v395, %v674
    %v676 = vpop.f32.mrf.mxu0
    %677 = vmatprep.mubr.f32.mxu0 0.0
    %678 = vmatmul.mubr.f32.gmra.mxu0 %v401
    %v679 = vpop.f32.mrf.mxu0
    %v680 = vadd.f32 %v395, %v679
    %v681 = vpop.f32.mrf.mxu0
    %682 = vmatprep.mubr.f32.mxu0 0.0
    %683 = vmatmul.mubr.f32.gmra.mxu0 %v404
    %v684 = vpop.f32.mrf.mxu0
    %v685 = vadd.f32 %v395, %v684
    %v686 = vpop.f32.mrf.mxu0
    %687 = vmatprep.mubr.f32.mxu0 0.0
    %688 = vmatmul.mubr.f32.gmra.mxu0 %v407
    %v689 = vpop.f32.mrf.mxu0
    %v690 = vadd.f32 %v395, %v689
    %v691 = vpop.f32.mrf.mxu0
    %692 = vmatprep.mubr.f32.mxu0 0.0
    %693 = vmatmul.mubr.f32.gmra.mxu0 %v410
    %v694 = vpop.f32.mrf.mxu0
    %v695 = vadd.f32 %v395, %v694
    %v696 = vpop.f32.mrf.mxu0
    %697 = vmatprep.mubr.f32.mxu0 0.0
    %698 = vmatmul.mubr.f32.gmra.mxu0 %v413
    %v699 = vpop.f32.mrf.mxu0
    %v700 = vadd.f32 %v395, %v699
    %v701 = vpop.f32.mrf.mxu0
    %702 = vmatprep.mubr.f32.mxu0 0.0
    %703 = vmatmul.mubr.f32.gmra.mxu0 %v416
    %v704 = vpop.f32.mrf.mxu0
    %v705 = vadd.f32 %v395, %v704
    %v706 = vpop.f32.mrf.mxu0
    %707 = vmatprep.mubr.f32.mxu0 0.0
    %708 = vmatmul.mubr.f32.gmra.mxu0 %v419
    %v709 = vpop.f32.mrf.mxu0
    %v710 = vadd.f32 %v395, %v709
    %v711 = vpop.f32.mrf.mxu0
    %712 = vmatprep.mubr.f32.mxu0 0.0
    %713 = vmatmul.mubr.f32.gmra.mxu0 %v422
    %v714 = vpop.f32.mrf.mxu0
    %v715 = vadd.f32 %v395, %v714
    %v716 = vpop.f32.mrf.mxu0
    %717 = vmatprep.mubr.f32.mxu0 0.0
    %718 = vmatmul.mubr.f32.gmra.mxu0 %v425
    %v719 = vpop.f32.mrf.mxu0
    %v720 = vadd.f32 %v395, %v719
    %v721 = vpop.f32.mrf.mxu0
    %722 = vmatprep.mubr.f32.mxu0 0.0
    %723 = vmatmul.mubr.f32.gmra.mxu0 %v428
    %v724 = vpop.f32.mrf.mxu0
    %v725 = vadd.f32 %v395, %v724
    %v726 = vpop.f32.mrf.mxu0
    %727 = vmatprep.mubr.f32.mxu0 0.0
    %728 = vmatmul.mubr.f32.gmra.mxu0 %v431
    %v729 = vpop.f32.mrf.mxu0
    %v730 = vadd.f32 %v395, %v729
    %v731 = vpop.f32.mrf.mxu0
    %732 = vmatprep.mubr.f32.mxu0 0.0
    %733 = vmatmul.mubr.f32.gmra.mxu0 %v434
    %v734 = vpop.f32.mrf.mxu0
    %v735 = vadd.f32 %v395, %v734
    %v736 = vpop.f32.mrf.mxu0
    %737 = vmatprep.mubr.f32.mxu0 0.0
    %738 = vmatmul.mubr.f32.gmra.mxu0 %v437
    %v739 = vpop.f32.mrf.mxu0
    %v740 = vadd.f32 %v395, %v739
    %v741 = vpop.f32.mrf.mxu0
    %742 = vmatprep.mubr.f32.mxu0 0.0
    %743 = vmatmul.mubr.f32.gmra.mxu0 %v440
    %v744 = vpop.f32.mrf.mxu0
    %v745 = vadd.f32 %v395, %v744
    %v746 = vpop.f32.mrf.mxu0
    %747 = vmatprep.mubr.f32.mxu0 0.0
    %748 = vmatmul.mubr.f32.gmra.mxu0 %v443
    %v749 = vpop.f32.mrf.mxu0
    %v750 = vadd.f32 %v395, %v749
    %v751 = vpop.f32.mrf.mxu0
    %752 = vdwg.mxu0
    %753 = vst [vmem:[#allocation5 + $0x80] sm:$0xff] %v675
    %754 = vst [vmem:[#allocation5 + $0x88] sm:$0xff] %v680
    %755 = vst [vmem:[#allocation5 + $0x90] sm:$0xff] %v685
    %756 = vst [vmem:[#allocation5 + $0x98] sm:$0xff] %v690
    %757 = vst [vmem:[#allocation5 + $0xa0] sm:$0xff] %v695
    %758 = vst [vmem:[#allocation5 + $0xa8] sm:$0xff] %v700
    %759 = vst [vmem:[#allocation5 + $0xb0] sm:$0xff] %v705
    %760 = vst [vmem:[#allocation5 + $0xb8] sm:$0xff] %v710
    %761 = vst [vmem:[#allocation5 + $0xc0] sm:$0xff] %v715
    %762 = vst [vmem:[#allocation5 + $0xc8] sm:$0xff] %v720
    %763 = vst [vmem:[#allocation5 + $0xd0] sm:$0xff] %v725
    %764 = vst [vmem:[#allocation5 + $0xd8] sm:$0xff] %v730
    %765 = vst [vmem:[#allocation5 + $0xe0] sm:$0xff] %v735
    %766 = vst [vmem:[#allocation5 + $0xe8] sm:$0xff] %v740
    %767 = vst [vmem:[#allocation5 + $0xf0] sm:$0xff] %v745
    %768 = vst [vmem:[#allocation5 + $0xf8] sm:$0xff] %v750
    // Predicated region
    $region18: #{segmentation_head.1} parent=1 // pred_check
      _
    $region19: #{segmentation_head.1} parent=1 // pred_check_branch
      %770 = sbr.rel (0) target = $region21
    $region20: #{segmentation_head.1} parent=1 // pred_region
      %s772 = ssub.s32 4096, 4096
      %773 = vsyncadd [#allocation6], %s772
      %s774 = sshll.u32 [#allocation5], 4
      %s775 = int_to_ptr.vmem [resolvable:$true] %s774
      %780 = dma.vmem_to_hbm [thread:$0]  %s775, 4096, %s5, [#allocation6], 128, 128, 8
    $region21: #{segmentation_head.1} parent=1 // pred_fallthru
      _
    // Predicated region
    $region22: #{segmentation_head.1} parent=1 // pred_check
      _
    $region23: #{segmentation_head.1} parent=1 // pred_check_branch
      %782 = sbr.rel (0) target = $region25
    $region24: #{segmentation_head.1} parent=1 // pred_region
      %783 = dma.done [#allocation6], 4096
    $region25: #{segmentation_head.1} parent=1 // pred_fallthru
      _
    %784 = vsyncpa [#allocation6], 1

</llo_original>
